<compile_context>
chip_gen: v7x
topology: tpu7x:2x2x1
jax: 0.10.0
libtpu: 0.0.40
codegen_flags: <defaults>
</compile_context>

<pallas_src>
import functools
import math

import jax
import jax.numpy as jnp
from jax import lax
from jax.experimental import pallas as pl
from jax.experimental.pallas import tpu as pltpu

_LANE = 128


def _to_i32(v):
    """Wrap a python int into signed int32 range (two's complement)."""
    v &= 0xFFFFFFFF
    return v - (1 << 32) if v >= (1 << 31) else v


# Hash constants (python ints; int32 arithmetic wraps in XLA).
_SEED_MULT = _to_i32(0x9E3779B9)
_PID_MULT = _to_i32(0x7FEB352D)
_ROW_MULT = _to_i32(0x01000193)
_COL_MULT = _to_i32(0x00ED5AD3)
_MIX1 = _to_i32(0x85EBCA6B)
_MIX2 = _to_i32(0xC2B2AE35)
_SIGN_BIT = _to_i32(0x80000000)


def _fmix32(x):
    """murmur3 finalizer: decorrelates a per-element counter into ~uniform bits."""
    x = x ^ lax.shift_right_logical(x, 16)
    x = x * _MIX1
    x = x ^ lax.shift_right_logical(x, 13)
    x = x * _MIX2
    x = x ^ lax.shift_right_logical(x, 16)
    return x


def _round_up(x, m):
    return (x + m - 1) // m * m


def _mlp_kernel(seed_ref, *refs, num_layers, apply_dropout,
                drop_threshold_biased, inv_keep):
    """refs = (x_ref, w0, b0, w1, b1, ..., w_{L-1}, b_{L-1}, out_ref)."""
    x_ref = refs[0]
    out_ref = refs[-1]
    param_refs = refs[1:-1]
    tb = x_ref.shape[0]

    if apply_dropout:
        # Per-grid-step base for the counter-based RNG.
        base = seed_ref[0] * _SEED_MULT + pl.program_id(0) * _PID_MULT
        # Hoisted row/col counter planes: JAX does not CSE iota/broadcast, so
        # build each distinct hidden width exactly once (not once per layer).
        rc_cache = {}
        for i in range(num_layers - 1):
            width = param_refs[2 * i].shape[1]
            if width not in rc_cache:
                r = lax.broadcasted_iota(jnp.int32, (tb, width), 0)
                c = lax.broadcasted_iota(jnp.int32, (tb, width), 1)
                rc_cache[width] = r * _ROW_MULT + c * _COL_MULT

    # bf16 activations into the MXU; f32 accumulation + epilogue.
    h = x_ref[...].astype(jnp.bfloat16)
    for i in range(num_layers):
        w = param_refs[2 * i][...]        # (f_in_pad, f_out_pad) bf16, VMEM-resident
        b = param_refs[2 * i + 1][...]    # (1, f_out_pad)        f32
        acc = jnp.dot(h, w, preferred_element_type=jnp.float32) + b
        if i < num_layers - 1:
            acc = jnp.maximum(acc, 0.0)   # ReLU
            if apply_dropout:
                # TODO(synk): RNG stream differs from torch's Philox (as any
                # reimplementation would); statistics match (keep prob = 1-p).
                bits = _fmix32(base + _to_i32((i + 1) * 0x9E3779B9)
                               + rc_cache[acc.shape[1]])
                # Unsigned compare via sign-bit flip on BOTH operands:
                #   u >= p*2^32  <=>  keep   (keep prob = 1 - p).
                keep = (bits ^ _SIGN_BIT) >= drop_threshold_biased
                acc = jnp.where(keep, acc * jnp.float32(inv_keep), 0.0)
            h = acc.astype(jnp.bfloat16)
        else:
            out_ref[...] = acc.astype(out_ref.dtype)


def init_params(features, key):
    """PyTorch-Linear-style init: U(-1/sqrt(fan_in), 1/sqrt(fan_in)).

    Weights are pre-transposed to (F_in, F_out) and stored as bf16 (MXU-native,
    halves HBM/VMEM traffic); biases stay f32 as (1, F_out).
    """
    params = []
    for i in range(len(features) - 1):
        fan_in, fan_out = features[i], features[i + 1]
        key, kw, kb = jax.random.split(key, 3)
        bound = 1.0 / math.sqrt(fan_in)
        w = jax.random.uniform(kw, (fan_in, fan_out), jnp.float32, -bound, bound)
        b = jax.random.uniform(kb, (1, fan_out), jnp.float32, -bound, bound)
        params.append((w.astype(jnp.bfloat16), b))
    return params


def _pad_params_for_mxu(params):
    """Zero-pad hidden-layer output dims (and matching next-layer input rows)
    to multiples of 128 lanes. Last layer's output stays unpadded (narrow
    masked store is cheaper than 8x padded writeback). Zero padding is exact:
    padded activation columns are 0 through ReLU/dropout and contribute 0
    downstream."""
    params = [list(p) for p in params]
    n = len(params)
    for i in range(n - 1):
        w, b = params[i]
        f_out = w.shape[1]
        f_pad = _round_up(f_out, _LANE)
        if f_pad != f_out:
            params[i][0] = jnp.pad(w, ((0, 0), (0, f_pad - f_out)))
            params[i][1] = jnp.pad(b, ((0, 0), (0, f_pad - f_out)))
            w2, b2 = params[i + 1]
            params[i + 1][0] = jnp.pad(w2, ((0, f_pad - f_out), (0, 0)))
            params[i + 1][1] = b2
    return [tuple(p) for p in params]


def _pick_batch_tile(B):
    """Target 256-512-row tiles (~85% of HBM roofline) and guarantee >= 2 grid
    steps when B allows, so the 'parallel' batch axis shards across v7x's two
    TensorCores. Always a multiple of 8; the ragged tail tile is masked."""
    if B <= 8:
        return 8
    if B <= 1024:
        return max(8, _round_up((B + 1) // 2, 8))
    return 512


def machine_learning_forward(x, params, *, dropout_rate=0.5, training=False,
                             seed=0, batch_tile=None, out_dtype=jnp.float32):
    """Forward pass of the MachineLearning MLP as one fused Pallas call.

    x: (B, features[0]) float32/bf16.  Returns (B, features[-1]) `out_dtype`
    (pass jnp.bfloat16 to halve output writeback when the consumer allows it).
    """
    B, f_in = x.shape
    params = _pad_params_for_mxu(list(params))
    num_layers = len(params)
    f_out = params[-1][0].shape[1]

    tb = _pick_batch_tile(B) if batch_tile is None else batch_tile
    grid = pl.cdiv(B, tb)

    apply_dropout = bool(training) and float(dropout_rate) > 0.0
    threshold_u32 = min(int(round(float(dropout_rate) * (2.0 ** 32))), 0xFFFFFFFF)
    inv_keep = 1.0 / (1.0 - float(dropout_rate)) if float(dropout_rate) < 1.0 else 0.0

    kernel = functools.partial(
        _mlp_kernel,
        num_layers=num_layers,
        apply_dropout=apply_dropout,
        # Sign bit flipped here so the in-kernel signed compare is an unsigned
        # compare against p*2^32 (fixes the keep-probability bug).
        drop_threshold_biased=_to_i32(threshold_u32 ^ 0x80000000),
        inv_keep=inv_keep,
    )

    seed_arr = jnp.array([seed], dtype=jnp.int32)
    # No batch padding: grid = cdiv(B, tb); Pallas masks the ragged tail's
    # output stores, and the garbage tail rows never mix into valid rows
    # (the MLP is row-wise).
    x_in = x.astype(jnp.bfloat16)

    flat_params = []
    for w, b in params:
        flat_params += [w.astype(jnp.bfloat16), b.astype(jnp.float32)]

    in_specs = [
        # seed scalar lives in SMEM
        pl.BlockSpec(memory_space=pltpu.MemorySpace.SMEM),
        # activations: tiled over batch, auto-pipelined
        pl.BlockSpec((tb, f_in), lambda i: (i, 0)),
    ]
    # Weights/biases: whole arrays resident in VMEM for the entire kernel —
    # a single copy (no per-grid-step DMA, no double-buffering of constants).
    for _ in params:
        in_specs.append(pl.BlockSpec(memory_space=pltpu.MemorySpace.VMEM))
        in_specs.append(pl.BlockSpec(memory_space=pltpu.MemorySpace.VMEM))

    # Narrow (masked) output store: f_out=16 stays 16 wide — 8x less HBM
    # writeback than padding to 128 lanes, and no wrapper slice pass.
    out_spec = pl.BlockSpec((tb, f_out), lambda i: (i, 0))

    # VMEM budget: resident params + double-buffered x/out tiles + activation
    # headroom; capped at 48 MiB to leave headroom under v7x's 64 MiB/TC.
    param_bytes = sum(w.size * 2 + b.size * 4 for w, b in params)
    io_bytes = (2 * tb * f_in * 2
                + 2 * tb * f_out * jnp.dtype(out_dtype).itemsize)
    widest = max(w.shape[1] for w, _ in params)
    act_bytes = 4 * tb * widest * 4
    vmem_limit = int(min(48 * 1024 * 1024,
                         max(16 * 1024 * 1024,
                             2 * (param_bytes + io_bytes + act_bytes))))

    out = pl.pallas_call(
        kernel,
        out_shape=jax.ShapeDtypeStruct((B, f_out), out_dtype),
        grid=(grid,),
        in_specs=in_specs,
        out_specs=out_spec,
        compiler_params=pltpu.CompilerParams(
            dimension_semantics=("parallel",),
            vmem_limit_bytes=vmem_limit),
    )(seed_arr, x_in, *flat_params)

    return out


def _reference_forward(x, params, *, dropout_rate=0.0, training=False,
                       seed=0, batch_tile=8):
    """Pure-JAX reference with the SAME bf16/f32 mix, padding and (for
    training) the SAME counter-based dropout stream as the kernel."""
    params = _pad_params_for_mxu(list(params))
    B = x.shape[0]
    tb = int(batch_tile)
    apply_dropout = bool(training) and float(dropout_rate) > 0.0
    threshold_u32 = min(int(round(float(dropout_rate) * (2.0 ** 32))), 0xFFFFFFFF)
    thr = jnp.int32(_to_i32(threshold_u32 ^ 0x80000000))
    inv_keep = 1.0 / (1.0 - float(dropout_rate)) if float(dropout_rate) < 1.0 else 0.0

    n = len(params)
    h = x.astype(jnp.bfloat16)
    out = None
    for i, (w, b) in enumerate(params):
        acc = jnp.dot(h, w.astype(jnp.bfloat16),
                      preferred_element_type=jnp.float32) + b.astype(jnp.float32)
        if i < n - 1:
            acc = jnp.maximum(acc, 0.0)
            if apply_dropout:
                rows = jnp.arange(B, dtype=jnp.int32)[:, None]
                cols = jnp.arange(acc.shape[1], dtype=jnp.int32)[None, :]
                tile = rows // jnp.int32(tb)
                local = rows % jnp.int32(tb)
                base = (jnp.int32(seed) * jnp.int32(_SEED_MULT)
                        + tile * jnp.int32(_PID_MULT))
                ctr = (base + jnp.int32(_to_i32((i + 1) * 0x9E3779B9))
                       + local * jnp.int32(_ROW_MULT) + cols * jnp.int32(_COL_MULT))
                bits = _fmix32(ctr)
                keep = (bits ^ jnp.int32(_SIGN_BIT)) >= thr
                acc = jnp.where(keep, acc * jnp.float32(inv_keep), 0.0)
            h = acc.astype(jnp.bfloat16)
        else:
            out = acc
    return out.astype(jnp.float32)


if __name__ == "__main__":
    # Small shapes consistent with the module: features = [32, 64, 64, 16]
    features = [32, 64, 64, 16]
    batch = 8

    key = jax.random.PRNGKey(0)
    key, kx, kp = jax.random.split(key, 3)
    x = jax.random.normal(kx, (batch, features[0]), dtype=jnp.float32)
    params = init_params(features, kp)

    tb = _pick_batch_tile(batch)

    # Eval-mode forward (dropout inactive) — deterministic, checkable.
    out = machine_learning_forward(x, params, dropout_rate=0.5, training=False,
                                   batch_tile=tb)
    out = jax.block_until_ready(out)
    ref = _reference_forward(x, params, training=False, batch_tile=tb)
    assert out.shape == (batch, features[-1])
    assert jnp.allclose(out, ref, atol=2e-2, rtol=2e-2), "eval mismatch vs reference"

    # Training path with p=0 must reduce to the eval result (exercises the
    # training code path deterministically).
    out_p0 = machine_learning_forward(x, params, dropout_rate=0.0, training=True,
                                      seed=7, batch_tile=tb)
    out_p0 = jax.block_until_ready(out_p0)
    assert jnp.allclose(out_p0, ref, atol=2e-2, rtol=2e-2), "p=0 train mismatch"

    # Training-mode dropout: exact validation against a pure-JAX reference
    # that replicates the counter-based hash (catches threshold/scale bugs).
    out_tr = machine_learning_forward(x, params, dropout_rate=0.5, training=True,
                                      seed=123, batch_tile=tb)
    out_tr = jax.block_until_ready(out_tr)
    ref_tr = _reference_forward(x, params, dropout_rate=0.5, training=True,
                                seed=123, batch_tile=tb)
    assert out_tr.shape == (batch, features[-1])
    assert jnp.allclose(out_tr, ref_tr, atol=2e-2, rtol=2e-2), \
        "train-mode dropout mismatch vs reference"

    print("KERNEL_OK")
</pallas_src>

<mosaic_0001>
module attributes {stable_mosaic.version = 11 : i64} {
  func.func @_mlp_kernel(%arg0: i32, %arg1: memref<1xi32, #tpu.memory_space<smem>>, %arg2: memref<8x32xbf16, #tpu.memory_space<vmem>>, %arg3: memref<32x128xbf16, #tpu.memory_space<vmem>>, %arg4: memref<1x128xf32, #tpu.memory_space<vmem>>, %arg5: memref<128x128xbf16, #tpu.memory_space<vmem>>, %arg6: memref<1x128xf32, #tpu.memory_space<vmem>>, %arg7: memref<128x16xbf16, #tpu.memory_space<vmem>>, %arg8: memref<1x16xf32, #tpu.memory_space<vmem>>, %arg9: memref<8x16xf32, #tpu.memory_space<vmem>>) attributes {dimension_semantics = [#tpu.dimension_semantics<parallel>], iteration_bounds = array<i64: 1>, scalar_prefetch = 0 : i64, scratch_operands = 0 : i64, tpu.core_type = #tpu.core_type<tc>, window_params = [{transform_indices = @transform_0, window_bounds = array<i64: 1>}, {transform_indices = @transform_1, window_bounds = array<i64: 8, 32>}, {pipeline_mode = #tpu.pipeline_mode<synchronous>, transform_indices = @transform_2, window_bounds = array<i64: 32, 128>}, {pipeline_mode = #tpu.pipeline_mode<synchronous>, transform_indices = @transform_3, window_bounds = array<i64: 1, 128>}, {pipeline_mode = #tpu.pipeline_mode<synchronous>, transform_indices = @transform_4, window_bounds = array<i64: 128, 128>}, {pipeline_mode = #tpu.pipeline_mode<synchronous>, transform_indices = @transform_5, window_bounds = array<i64: 1, 128>}, {pipeline_mode = #tpu.pipeline_mode<synchronous>, transform_indices = @transform_6, window_bounds = array<i64: 128, 16>}, {pipeline_mode = #tpu.pipeline_mode<synchronous>, transform_indices = @transform_7, window_bounds = array<i64: 1, 16>}, {transform_indices = @transform_8, window_bounds = array<i64: 8, 16>}]} {
    %c0 = arith.constant 0 : index
    %c0_0 = arith.constant 0 : index
    %0 = vector.load %arg2[%c0, %c0_0] : memref<8x32xbf16, #tpu.memory_space<vmem>>, vector<8x32xbf16>
    %c0_1 = arith.constant 0 : index
    %c0_2 = arith.constant 0 : index
    %1 = vector.load %arg3[%c0_1, %c0_2] : memref<32x128xbf16, #tpu.memory_space<vmem>>, vector<32x128xbf16>
    %c0_3 = arith.constant 0 : index
    %c0_4 = arith.constant 0 : index
    %2 = vector.load %arg4[%c0_3, %c0_4] : memref<1x128xf32, #tpu.memory_space<vmem>>, vector<1x128xf32>
    %cst = arith.constant dense<0.000000e+00> : vector<8x128xf32>
    %3 = tpu.matmul %0, %1, %cst {dimension_numbers = #tpu.dot_dimension_numbers<[1], [0], [0], [1], [0, 0, 1, 1], [], []>} : vector<8x32xbf16>, vector<32x128xbf16>, vector<8x128xf32> -> vector<8x128xf32>
    %4 = vector.broadcast %2 : vector<1x128xf32> to vector<8x128xf32>
    %5 = arith.addf %3, %4 : vector<8x128xf32>
    %cst_5 = arith.constant 0.000000e+00 : f32
    %6 = vector.broadcast %cst_5 : f32 to vector<8x128xf32>
    %7 = arith.maximumf %5, %6 : vector<8x128xf32>
    %8 = arith.truncf %7 : vector<8x128xf32> to vector<8x128xbf16>
    %c0_6 = arith.constant 0 : index
    %c0_7 = arith.constant 0 : index
    %9 = vector.load %arg5[%c0_6, %c0_7] : memref<128x128xbf16, #tpu.memory_space<vmem>>, vector<128x128xbf16>
    %c0_8 = arith.constant 0 : index
    %c0_9 = arith.constant 0 : index
    %10 = vector.load %arg6[%c0_8, %c0_9] : memref<1x128xf32, #tpu.memory_space<vmem>>, vector<1x128xf32>
    %cst_10 = arith.constant dense<0.000000e+00> : vector<8x128xf32>
    %11 = tpu.matmul %8, %9, %cst_10 {dimension_numbers = #tpu.dot_dimension_numbers<[1], [0], [0], [1], [0, 0, 1, 1], [], []>} : vector<8x128xbf16>, vector<128x128xbf16>, vector<8x128xf32> -> vector<8x128xf32>
    %12 = vector.broadcast %10 : vector<1x128xf32> to vector<8x128xf32>
    %13 = arith.addf %11, %12 : vector<8x128xf32>
    %cst_11 = arith.constant 0.000000e+00 : f32
    %14 = vector.broadcast %cst_11 : f32 to vector<8x128xf32>
    %15 = arith.maximumf %13, %14 : vector<8x128xf32>
    %16 = arith.truncf %15 : vector<8x128xf32> to vector<8x128xbf16>
    %c0_12 = arith.constant 0 : index
    %c0_13 = arith.constant 0 : index
    %17 = vector.load %arg7[%c0_12, %c0_13] : memref<128x16xbf16, #tpu.memory_space<vmem>>, vector<128x16xbf16>
    %c0_14 = arith.constant 0 : index
    %c0_15 = arith.constant 0 : index
    %18 = vector.load %arg8[%c0_14, %c0_15] : memref<1x16xf32, #tpu.memory_space<vmem>>, vector<1x16xf32>
    %cst_16 = arith.constant dense<0.000000e+00> : vector<8x16xf32>
    %19 = tpu.matmul %16, %17, %cst_16 {dimension_numbers = #tpu.dot_dimension_numbers<[1], [0], [0], [1], [0, 0, 1, 1], [], []>} : vector<8x128xbf16>, vector<128x16xbf16>, vector<8x16xf32> -> vector<8x16xf32>
    %20 = vector.broadcast %18 : vector<1x16xf32> to vector<8x16xf32>
    %21 = arith.addf %19, %20 : vector<8x16xf32>
    %c0_17 = arith.constant 0 : index
    %c0_18 = arith.constant 0 : index
    %22 = vector.load %arg9[%c0_17, %c0_18] : memref<8x16xf32, #tpu.memory_space<vmem>>, vector<8x16xf32>
    tpu.vector_store %arg9[%c0_17, %c0_18], %21 {strides = array<i32>} : memref<8x16xf32, #tpu.memory_space<vmem>>, vector<8x16xf32>,
    return
  }
  func.func @transform_0(%arg0: i32) -> i32 {
    %c0_i32 = arith.constant 0 : i32
    %c0_i32_0 = arith.constant 0 : i32
    return %c0_i32 : i32
  }
  func.func @transform_1(%arg0: i32) -> (i32, i32) {
    %c0_i32 = arith.constant 0 : i32
    %c0_i32_0 = arith.constant 0 : i32
    return %arg0, %c0_i32 : i32, i32
  }
  func.func @transform_2(%arg0: i32) -> (i32, i32) {
    %c0_i32 = arith.constant 0 : i32
    %c0_i32_0 = arith.constant 0 : i32
    %c0_i32_1 = arith.constant 0 : i32
    return %c0_i32, %c0_i32_0 : i32, i32
  }
  func.func @transform_3(%arg0: i32) -> (i32, i32) {
    %c0_i32 = arith.constant 0 : i32
    %c0_i32_0 = arith.constant 0 : i32
    %c0_i32_1 = arith.constant 0 : i32
    return %c0_i32, %c0_i32_0 : i32, i32
  }
  func.func @transform_4(%arg0: i32) -> (i32, i32) {
    %c0_i32 = arith.constant 0 : i32
    %c0_i32_0 = arith.constant 0 : i32
    %c0_i32_1 = arith.constant 0 : i32
    return %c0_i32, %c0_i32_0 : i32, i32
  }
  func.func @transform_5(%arg0: i32) -> (i32, i32) {
    %c0_i32 = arith.constant 0 : i32
    %c0_i32_0 = arith.constant 0 : i32
    %c0_i32_1 = arith.constant 0 : i32
    return %c0_i32, %c0_i32_0 : i32, i32
  }
  func.func @transform_6(%arg0: i32) -> (i32, i32) {
    %c0_i32 = arith.constant 0 : i32
    %c0_i32_0 = arith.constant 0 : i32
    %c0_i32_1 = arith.constant 0 : i32
    return %c0_i32, %c0_i32_0 : i32, i32
  }
  func.func @transform_7(%arg0: i32) -> (i32, i32) {
    %c0_i32 = arith.constant 0 : i32
    %c0_i32_0 = arith.constant 0 : i32
    %c0_i32_1 = arith.constant 0 : i32
    return %c0_i32, %c0_i32_0 : i32, i32
  }
  func.func @transform_8(%arg0: i32) -> (i32, i32) {
    %c0_i32 = arith.constant 0 : i32
    %c0_i32_0 = arith.constant 0 : i32
    return %arg0, %c0_i32 : i32, i32
  }
}

</mosaic_0001>

<llo_original>
// kernel: tpu_custom_call.1
$region0: #{tpu_custom_call.1}
  #allocation0 [shape = 'u32[]', space=smem, size = 0x4, offset = 0x4, fixed_abs, tag = 'smem constant byte address 0x4 - core index']
  #allocation1 [shape = 'u32[144,128]{1,0:T(1,128)}', space=vmem, size = 0x12000, scoped, tag = 'internal scratch']
  #allocation2 [shape = 's32[1]{0:T(128)S(6)}', space=smem, size = 0x200, scoped, tag = 'scoped memory for tpu_custom_call.1']
  %s0 = inlined_call_operand.<no memory space> [shape: s32[1], index: 0, kind: input, shape index: {}]
  %s1 = inlined_call_operand.hbm [shape: bf16[8,32], index: 1, kind: input, shape index: {}]
  %s2 = inlined_call_operand.vmem [shape: bf16[32,128], index: 2, kind: input, shape index: {}]
  %s3 = inlined_call_operand.vmem [shape: f32[1,128], index: 3, kind: input, shape index: {}]
  %s4 = inlined_call_operand.vmem [shape: bf16[128,128], index: 4, kind: input, shape index: {}]
  %s5 = inlined_call_operand.vmem [shape: f32[1,128], index: 5, kind: input, shape index: {}]
  %s6 = inlined_call_operand.vmem [shape: bf16[128,16], index: 6, kind: input, shape index: {}]
  %s7 = inlined_call_operand.vmem [shape: f32[1,16], index: 7, kind: input, shape index: {}]
  %s8 = inlined_call_operand.hbm [shape: f32[8,16], index: 8, kind: output, shape index: {}]
  %s9 = sld [smem:[#allocation0]]
  $region46: #{tpu_custom_call.1} parent=0
    _
  %s11 = ssub.s32 1, %s9
  %s12 = scalar_select 0, %s11, %s9
  %13 = sst [smem:[#allocation2]] %s0
  $region1: #{tpu_custom_call.1} parent=0
    #allocation3 [shape = 'u8[2048]{0}', space=vmem, size = 0x800, scoped, tag = 'input window, operand 1, single buffered']
    #allocation4 [shape = 's32[1]{0}', space=sflag, size = 0x4, scoped, tag = 'scoped memory for tpu_custom_call.1']
    #allocation5 [shape = 's32[1]{0}', space=sflag, size = 0x4, scoped, tag = 'scoped memory for tpu_custom_call.1']
    #allocation6 [shape = 'u8[4096]{0}', space=vmem, size = 0x1000, scoped, tag = 'output window, operand 0, single buffered']
    %14 = vsyncpa [#allocation4], 0
    %15 = vsyncpa [#allocation5], 0
    // Predicated region
    $region2: #{tpu_custom_call.1} parent=1 // pred_check
      _
    $region3: #{tpu_custom_call.1} parent=1 // pred_check_branch
      %17 = sbr.rel (0) target = $region5
    $region4: #{tpu_custom_call.1} parent=1 // pred_region
      _
    $region5: #{tpu_custom_call.1} parent=1 // pred_fallthru
      _
    // Predicated region
    $region6: #{tpu_custom_call.1} parent=1 // pred_check
      _
    $region7: #{tpu_custom_call.1} parent=1 // pred_check_branch
      %19 = sbr.rel (0) target = $region9
    $region8: #{tpu_custom_call.1} parent=1 // pred_region
      %s21 = ssub.s32 64, 64
      %22 = vsyncadd [#allocation4], %s21
      %s24 = sshll.u32 [#allocation3], 4
      %s25 = int_to_ptr.vmem [resolvable:$true] %s24
      %27 = dma.hbm_to_vmem [thread:$0]  %s1, 64, %s25, [#allocation4]
    $region9: #{tpu_custom_call.1} parent=1 // pred_fallthru
      _
    // Predicated region
    $region10: #{tpu_custom_call.1} parent=1 // pred_check
      _
    $region11: #{tpu_custom_call.1} parent=1 // pred_check_branch
      %29 = sbr.rel (0) target = $region13
    $region12: #{tpu_custom_call.1} parent=1 // pred_region
      _
    $region13: #{tpu_custom_call.1} parent=1 // pred_fallthru
      _
    // Predicated region
    $region14: #{tpu_custom_call.1} parent=1 // pred_check
      _
    $region15: #{tpu_custom_call.1} parent=1 // pred_check_branch
      %31 = sbr.rel (0) target = $region17
    $region16: #{tpu_custom_call.1} parent=1 // pred_region
      _
    $region17: #{tpu_custom_call.1} parent=1 // pred_fallthru
      _
    // Predicated region
    $region18: #{tpu_custom_call.1} parent=1 // pred_check
      _
    $region19: #{tpu_custom_call.1} parent=1 // pred_check_branch
      %33 = sbr.rel (0) target = $region21
    $region20: #{tpu_custom_call.1} parent=1 // pred_region
      _
    $region21: #{tpu_custom_call.1} parent=1 // pred_fallthru
      _
    // Predicated region
    $region22: #{tpu_custom_call.1} parent=1 // pred_check
      _
    $region23: #{tpu_custom_call.1} parent=1 // pred_check_branch
      %35 = sbr.rel (0) target = $region25
    $region24: #{tpu_custom_call.1} parent=1 // pred_region
      _
    $region25: #{tpu_custom_call.1} parent=1 // pred_fallthru
      _
    // Predicated region
    $region26: #{tpu_custom_call.1} parent=1 // pred_check
      _
    $region27: #{tpu_custom_call.1} parent=1 // pred_check_branch
      %37 = sbr.rel (0) target = $region29
    $region28: #{tpu_custom_call.1} parent=1 // pred_region
      _
    $region29: #{tpu_custom_call.1} parent=1 // pred_fallthru
      _
    // Predicated region
    $region30: #{tpu_custom_call.1} parent=1 // pred_check
      _
    $region31: #{tpu_custom_call.1} parent=1 // pred_check_branch
      %39 = sbr.rel (0) target = $region33
    $region32: #{tpu_custom_call.1} parent=1 // pred_region
      _
    $region33: #{tpu_custom_call.1} parent=1 // pred_fallthru
      _
    // Predicated region
    $region34: #{tpu_custom_call.1} parent=1 // pred_check
      _
    $region35: #{tpu_custom_call.1} parent=1 // pred_check_branch
      %41 = sbr.rel (0) target = $region37
    $region36: #{tpu_custom_call.1} parent=1 // pred_region
      %42 = dma.done [#allocation4], 64
    $region37: #{tpu_custom_call.1} parent=1 // pred_fallthru
      _
    %v44 = vld [vmem:[#allocation3] sm:$0xf]
    %v45 = vld [vmem:[%s2] sm:$0xf]
    %v46 = vld [vmem:[%s2 + $0x4] sm:$0xf]
    %v47 = vld [vmem:[%s2 + $0x8] sm:$0xf]
    %v48 = vld [vmem:[%s2 + $0xc] sm:$0xf]
    %v49 = vld [vmem:[%s3] sm:$0x1]
    %v51 = vlaneseq
    %v52 = vshrl.u32 %v51, 7
    %v53 = vsub.s32 0, %v52
    %v54 = vrot.slane %v49, %v53
    %v60 = vunpack.c.l.b16 %v45
    %v61 = vunpack.c.l.b16 %v46
    %v62 = vunpack.c.l.b16 %v47
    %v63 = vunpack.c.l.b16 %v48
    %v64 = vpack.c.b16 %v61, %v60
    %v65 = vpack.c.b16 %v63, %v62
    %vm68 = vcmask 261120
    %v70 = vsel %vm68, %v44, 0
    %72 = vmatprep.subr.bf16.mxu0 0
    %73 = vmatpush1.bf16.msra.mxu0 %v64
    %74 = vmatprep.subr.bf16.mxu0 0
    %75 = vmatpush1.bf16.msra.mxu0 %v65
    %76 = vmatprep.subr.bf16.mxu0 0
    %77 = vmatpush1.bf16.msra.mxu0 0
    %78 = vmatprep.subr.bf16.mxu0 0
    %79 = vmatpush1.bf16.msra.mxu0 0
    %80 = vmatprep.subr.bf16.mxu0 0
    %81 = vmatpush1.bf16.msra.mxu0 0
    %82 = vmatprep.subr.bf16.mxu0 0
    %83 = vmatpush1.bf16.msra.mxu0 0
    %84 = vmatprep.subr.bf16.mxu0 0
    %85 = vmatpush1.bf16.msra.mxu0 0
    %86 = vmatprep.subr.bf16.mxu0 0
    %87 = vmatpush1.bf16.msra.mxu0 0
    %88 = vmatprep.subr.bf16.mxu0 0
    %89 = vmatpush1.bf16.msra.mxu0 0
    %90 = vmatprep.subr.bf16.mxu0 0
    %91 = vmatpush1.bf16.msra.mxu0 0
    %92 = vmatprep.subr.bf16.mxu0 0
    %93 = vmatpush1.bf16.msra.mxu0 0
    %94 = vmatprep.subr.bf16.mxu0 0
    %95 = vmatpush1.bf16.msra.mxu0 0
    %96 = vmatprep.subr.bf16.mxu0 0
    %97 = vmatpush1.bf16.msra.mxu0 0
    %98 = vmatprep.subr.bf16.mxu0 0
    %99 = vmatpush1.bf16.msra.mxu0 0
    %100 = vmatprep.subr.bf16.mxu0 0
    %101 = vmatpush1.bf16.msra.mxu0 0
    %102 = vmatprep.subr.bf16.mxu0 0
    %103 = vmatpush1.bf16.msra.mxu0 0
    %104 = vmatprep.mubr.bf16.mxu0 0
    %105 = vmatmul.mubr.bf16.gmra.mrb[0].mxu0 %v70
    %v106 = vpop.f32.mrb[0].mxu0
    %v107 = vadd.f32 %v54, %v106
    %v108 = vpop.f32.mrb[0].mxu0
    %v109 = vpop.f32.mrb[0].mxu0
    %v110 = vpop.f32.mrb[0].mxu0
    %111 = vdwg.mxu0
    %v112 = vmax.f32 %v107, 0.0
    %v113 = vpack.c.bf16 %v112, %v112
    %v114 = vld [vmem:[%s4] sm:$0xf]
    %v115 = vld [vmem:[%s4 + $0x4] sm:$0xf]
    %v116 = vld [vmem:[%s4 + $0x8] sm:$0xf]
    %v117 = vld [vmem:[%s4 + $0xc] sm:$0xf]
    %v118 = vld [vmem:[%s4 + $0x10] sm:$0xf]
    %v119 = vld [vmem:[%s4 + $0x14] sm:$0xf]
    %v120 = vld [vmem:[%s4 + $0x18] sm:$0xf]
    %v121 = vld [vmem:[%s4 + $0x1c] sm:$0xf]
    %v122 = vld [vmem:[%s4 + $0x20] sm:$0xf]
    %v123 = vld [vmem:[%s4 + $0x24] sm:$0xf]
    %v124 = vld [vmem:[%s4 + $0x28] sm:$0xf]
    %v125 = vld [vmem:[%s4 + $0x2c] sm:$0xf]
    %v126 = vld [vmem:[%s4 + $0x30] sm:$0xf]
    %v127 = vld [vmem:[%s4 + $0x34] sm:$0xf]
    %v128 = vld [vmem:[%s4 + $0x38] sm:$0xf]
    %v129 = vld [vmem:[%s4 + $0x3c] sm:$0xf]
    %v130 = vld [vmem:[%s5] sm:$0x1]
    %v132 = vlaneseq
    %v133 = vshrl.u32 %v132, 7
    %v134 = vsub.s32 0, %v133
    %v135 = vrot.slane %v130, %v134
    %v153 = vunpack.c.l.b16 %v114
    %v154 = vunpack.c.l.b16 %v115
    %v155 = vunpack.c.l.b16 %v116
    %v156 = vunpack.c.l.b16 %v117
    %v157 = vunpack.c.l.b16 %v118
    %v158 = vunpack.c.l.b16 %v119
    %v159 = vunpack.c.l.b16 %v120
    %v160 = vunpack.c.l.b16 %v121
    %v161 = vunpack.c.l.b16 %v122
    %v162 = vunpack.c.l.b16 %v123
    %v163 = vunpack.c.l.b16 %v124
    %v164 = vunpack.c.l.b16 %v125
    %v165 = vunpack.c.l.b16 %v126
    %v166 = vunpack.c.l.b16 %v127
    %v167 = vunpack.c.l.b16 %v128
    %v168 = vunpack.c.l.b16 %v129
    %v169 = vpack.c.b16 %v154, %v153
    %v170 = vpack.c.b16 %v156, %v155
    %v171 = vpack.c.b16 %v158, %v157
    %v172 = vpack.c.b16 %v160, %v159
    %v173 = vpack.c.b16 %v162, %v161
    %v174 = vpack.c.b16 %v164, %v163
    %v175 = vpack.c.b16 %v166, %v165
    %v176 = vpack.c.b16 %v168, %v167
    %185 = vmatprep.subr.bf16.mxu0 0
    %186 = vmatpush1.bf16.msra.mxu0 %v169
    %187 = vmatprep.subr.bf16.mxu0 0
    %188 = vmatpush1.bf16.msra.mxu0 %v170
    %189 = vmatprep.subr.bf16.mxu0 0
    %190 = vmatpush1.bf16.msra.mxu0 %v171
    %191 = vmatprep.subr.bf16.mxu0 0
    %192 = vmatpush1.bf16.msra.mxu0 %v172
    %193 = vmatprep.subr.bf16.mxu0 0
    %194 = vmatpush1.bf16.msra.mxu0 %v173
    %195 = vmatprep.subr.bf16.mxu0 0
    %196 = vmatpush1.bf16.msra.mxu0 %v174
    %197 = vmatprep.subr.bf16.mxu0 0
    %198 = vmatpush1.bf16.msra.mxu0 %v175
    %199 = vmatprep.subr.bf16.mxu0 0
    %200 = vmatpush1.bf16.msra.mxu0 %v176
    %201 = vmatprep.subr.bf16.mxu0 0
    %202 = vmatpush1.bf16.msra.mxu0 0
    %203 = vmatprep.subr.bf16.mxu0 0
    %204 = vmatpush1.bf16.msra.mxu0 0
    %205 = vmatprep.subr.bf16.mxu0 0
    %206 = vmatpush1.bf16.msra.mxu0 0
    %207 = vmatprep.subr.bf16.mxu0 0
    %208 = vmatpush1.bf16.msra.mxu0 0
    %209 = vmatprep.subr.bf16.mxu0 0
    %210 = vmatpush1.bf16.msra.mxu0 0
    %211 = vmatprep.subr.bf16.mxu0 0
    %212 = vmatpush1.bf16.msra.mxu0 0
    %213 = vmatprep.subr.bf16.mxu0 0
    %214 = vmatpush1.bf16.msra.mxu0 0
    %215 = vmatprep.subr.bf16.mxu0 0
    %216 = vmatpush1.bf16.msra.mxu0 0
    %217 = vmatprep.mubr.bf16.mxu0 0
    %218 = vmatmul.mubr.bf16.gmra.mrb[0].mxu0 %v113
    %v219 = vpop.f32.mrb[0].mxu0
    %v220 = vadd.f32 %v135, %v219
    %v221 = vpop.f32.mrb[0].mxu0
    %v222 = vpop.f32.mrb[0].mxu0
    %v223 = vpop.f32.mrb[0].mxu0
    %224 = vdwg.mxu0
    %v225 = vmax.f32 %v220, 0.0
    %v226 = vpack.c.bf16 %v225, %v225
    %v227 = vld [vmem:[%s6] sm:$0xf]
    %v228 = vld [vmem:[%s6 + $0x4] sm:$0xf]
    %v229 = vld [vmem:[%s6 + $0x8] sm:$0xf]
    %v230 = vld [vmem:[%s6 + $0xc] sm:$0xf]
    %v231 = vld [vmem:[%s6 + $0x10] sm:$0xf]
    %v232 = vld [vmem:[%s6 + $0x14] sm:$0xf]
    %v233 = vld [vmem:[%s6 + $0x18] sm:$0xf]
    %v234 = vld [vmem:[%s6 + $0x1c] sm:$0xf]
    %v235 = vld [vmem:[%s6 + $0x20] sm:$0xf]
    %v236 = vld [vmem:[%s6 + $0x24] sm:$0xf]
    %v237 = vld [vmem:[%s6 + $0x28] sm:$0xf]
    %v238 = vld [vmem:[%s6 + $0x2c] sm:$0xf]
    %v239 = vld [vmem:[%s6 + $0x30] sm:$0xf]
    %v240 = vld [vmem:[%s6 + $0x34] sm:$0xf]
    %v241 = vld [vmem:[%s6 + $0x38] sm:$0xf]
    %v242 = vld [vmem:[%s6 + $0x3c] sm:$0xf]
    %v243 = vld [vmem:[%s7] sm:$0x1]
    %v245 = vlaneseq
    %v246 = vshrl.u32 %v245, 7
    %v247 = vsub.s32 0, %v246
    %v248 = vrot.slane %v243, %v247
    %v266 = vunpack.c.l.b16 %v227
    %v267 = vunpack.c.l.b16 %v228
    %v268 = vunpack.c.l.b16 %v229
    %v269 = vunpack.c.l.b16 %v230
    %v270 = vunpack.c.l.b16 %v231
    %v271 = vunpack.c.l.b16 %v232
    %v272 = vunpack.c.l.b16 %v233
    %v273 = vunpack.c.l.b16 %v234
    %v274 = vunpack.c.l.b16 %v235
    %v275 = vunpack.c.l.b16 %v236
    %v276 = vunpack.c.l.b16 %v237
    %v277 = vunpack.c.l.b16 %v238
    %v278 = vunpack.c.l.b16 %v239
    %v279 = vunpack.c.l.b16 %v240
    %v280 = vunpack.c.l.b16 %v241
    %v281 = vunpack.c.l.b16 %v242
    %v282 = vpack.c.b16 %v267, %v266
    %v283 = vpack.c.b16 %v269, %v268
    %v284 = vpack.c.b16 %v271, %v270
    %v285 = vpack.c.b16 %v273, %v272
    %v286 = vpack.c.b16 %v275, %v274
    %v287 = vpack.c.b16 %v277, %v276
    %v288 = vpack.c.b16 %v279, %v278
    %v289 = vpack.c.b16 %v281, %v280
    %298 = vmatprep.subr.bf16.mxu0 0
    %299 = vmatpush1.bf16.msra.mxu0 %v282
    %300 = vmatprep.subr.bf16.mxu0 0
    %301 = vmatpush1.bf16.msra.mxu0 %v283
    %302 = vmatprep.subr.bf16.mxu0 0
    %303 = vmatpush1.bf16.msra.mxu0 %v284
    %304 = vmatprep.subr.bf16.mxu0 0
    %305 = vmatpush1.bf16.msra.mxu0 %v285
    %306 = vmatprep.subr.bf16.mxu0 0
    %307 = vmatpush1.bf16.msra.mxu0 %v286
    %308 = vmatprep.subr.bf16.mxu0 0
    %309 = vmatpush1.bf16.msra.mxu0 %v287
    %310 = vmatprep.subr.bf16.mxu0 0
    %311 = vmatpush1.bf16.msra.mxu0 %v288
    %312 = vmatprep.subr.bf16.mxu0 0
    %313 = vmatpush1.bf16.msra.mxu0 %v289
    %314 = vmatprep.subr.bf16.mxu0 0
    %315 = vmatpush1.bf16.msra.mxu0 0
    %316 = vmatprep.subr.bf16.mxu0 0
    %317 = vmatpush1.bf16.msra.mxu0 0
    %318 = vmatprep.subr.bf16.mxu0 0
    %319 = vmatpush1.bf16.msra.mxu0 0
    %320 = vmatprep.subr.bf16.mxu0 0
    %321 = vmatpush1.bf16.msra.mxu0 0
    %322 = vmatprep.subr.bf16.mxu0 0
    %323 = vmatpush1.bf16.msra.mxu0 0
    %324 = vmatprep.subr.bf16.mxu0 0
    %325 = vmatpush1.bf16.msra.mxu0 0
    %326 = vmatprep.subr.bf16.mxu0 0
    %327 = vmatpush1.bf16.msra.mxu0 0
    %328 = vmatprep.subr.bf16.mxu0 0
    %329 = vmatpush1.bf16.msra.mxu0 0
    %330 = vmatprep.mubr.bf16.mxu0 0
    %331 = vmatmul.mubr.bf16.gmra.mrb[0].mxu0 %v226
    %v332 = vpop.f32.mrb[0].mxu0
    %v333 = vadd.f32 %v248, %v332
    %v334 = vpop.f32.mrb[0].mxu0
    %v335 = vpop.f32.mrb[0].mxu0
    %v336 = vpop.f32.mrb[0].mxu0
    %337 = vdwg.mxu0
    %vm338 = vcmask 130048
    %339 = vst.msk [vmem:[#allocation6] sm:$0xff] %vm338, %v333
    // Predicated region
    $region38: #{tpu_custom_call.1} parent=1 // pred_check
      _
    $region39: #{tpu_custom_call.1} parent=1 // pred_check_branch
      %341 = sbr.rel (0) target = $region41
    $region40: #{tpu_custom_call.1} parent=1 // pred_region
      %s343 = ssub.s32 128, 128
      %344 = vsyncadd [#allocation5], %s343
      %s346 = sshll.u32 [#allocation6], 4
      %s347 = int_to_ptr.vmem [resolvable:$true] %s346
      %349 = dma.vmem_to_hbm [thread:$0]  %s347, 128, %s8, [#allocation5]
    $region41: #{tpu_custom_call.1} parent=1 // pred_fallthru
      _
    // Predicated region
    $region42: #{tpu_custom_call.1} parent=1 // pred_check
      _
    $region43: #{tpu_custom_call.1} parent=1 // pred_check_branch
      %351 = sbr.rel (0) target = $region45
    $region44: #{tpu_custom_call.1} parent=1 // pred_region
      %352 = dma.done [#allocation5], 128
    $region45: #{tpu_custom_call.1} parent=1 // pred_fallthru
      _
    %353 = vsyncpa [#allocation4], 1
    %354 = vsyncpa [#allocation5], 1

</llo_original>
